<compile_context>
chip_gen: v6e
topology: v6e:2x2x1
jax: 0.10.0
libtpu: 0.0.40
codegen_flags: <defaults>
</compile_context>

<pallas_src>
import functools

import jax
import jax.numpy as jnp
from jax.experimental import pallas as pl
from jax.experimental.pallas import tpu as pltpu


# Below this size a 2-way split only adds fixed per-step overhead.
_SPLIT_MIN_BYTES = 512 * 1024


def _prefix_copy_kernel(chunk_rows, table_ref, out_ref, sem):
    """Copy rows [i*chunk_rows, (i+1)*chunk_rows) of table_ref into out_ref (HBM->HBM)."""
    start = pl.program_id(0) * chunk_rows
    cp = pltpu.make_async_copy(
        table_ref.at[pl.ds(start, chunk_rows)],
        out_ref.at[pl.ds(start, chunk_rows)],
        sem,
    )
    cp.start()
    cp.wait()


def _copy_leading_rows(table2d: jax.Array, n_rows: int) -> jax.Array:
    """Copy the first `n_rows` rows of `table2d` via direct HBM->HBM DMA."""
    max_rows, cols = table2d.shape
    assert 0 < n_rows <= max_rows
    itemsize = jnp.dtype(table2d.dtype).itemsize
    # dtype-aware sublane packing: f32 -> 8 rows/vreg, bf16 -> 16, int8/fp8 -> 32.
    sublane = max(8, 32 // itemsize)

    # Two half-prefix DMAs on a parallel grid (one per v7x TensorCore) when the
    # copy is big enough to benefit and splits on a sublane-aligned boundary;
    # otherwise a single DMA covering the whole prefix.
    total_bytes = n_rows * cols * itemsize
    if total_bytes >= _SPLIT_MIN_BYTES and n_rows % (2 * sublane) == 0:
        num_chunks = 2
    else:
        num_chunks = 1
    chunk_rows = n_rows // num_chunks

    kernel = functools.partial(_prefix_copy_kernel, chunk_rows)
    return pl.pallas_call(
        kernel,
        out_shape=jax.ShapeDtypeStruct((n_rows, cols), table2d.dtype),
        grid_spec=pltpu.PrefetchScalarGridSpec(
            num_scalar_prefetch=0,
            grid=(num_chunks,),
            in_specs=[pl.BlockSpec(memory_space=pl.ANY)],   # raw HBM ref, no auto-DMA
            out_specs=pl.BlockSpec(memory_space=pl.ANY),    # written only via manual DMA
            scratch_shapes=[pltpu.SemaphoreType.DMA(())],
        ),
        compiler_params=pltpu.CompilerParams(
            dimension_semantics=("parallel",),
            has_side_effects=True,
        ),
        cost_estimate=pl.CostEstimate(
            flops=0, transcendentals=0, bytes_accessed=2 * total_bytes),
    )(table2d)


def learned_positional_embeddings(pe_table: jax.Array, length: int) -> jax.Array:
    """Pallas equivalent of LearnedPositionalEmbeddings.forward(length).

    Returns pe_table[:length] with a leading batch dim of 1: (1, length, width).
    `length` must be a static Python int.
    """
    max_len, width = pe_table.shape
    assert 0 < length <= max_len, (length, max_len)
    out = _copy_leading_rows(pe_table, length)
    return out[None, :, :]


if __name__ == "__main__":
    key = jax.random.PRNGKey(0)

    # Small case matching the module spec (single-DMA path).
    WIDTH, MAX_LEN, LENGTH = 32, 16, 8
    pe_weight = jax.random.normal(key, (MAX_LEN, WIDTH), dtype=jnp.float32)
    out = jax.block_until_ready(learned_positional_embeddings(pe_weight, LENGTH))
    ref = pe_weight[:LENGTH][None, :, :]
    assert out.shape == (1, LENGTH, WIDTH), out.shape
    assert out.dtype == jnp.float32
    assert jnp.array_equal(out, ref), "mismatch vs reference (small case)"

    # Larger case exercising the 2-chunk (per-TensorCore) DMA path.
    WIDTH2, MAX_LEN2, LENGTH2 = 128, 4096, 2048
    pe_weight2 = jax.random.normal(key, (MAX_LEN2, WIDTH2), dtype=jnp.float32)
    out2 = jax.block_until_ready(learned_positional_embeddings(pe_weight2, LENGTH2))
    ref2 = pe_weight2[:LENGTH2][None, :, :]
    assert out2.shape == (1, LENGTH2, WIDTH2), out2.shape
    assert jnp.array_equal(out2, ref2), "mismatch vs reference (split case)"

    print("KERNEL_OK")
</pallas_src>

<mosaic_0001>
module attributes {stable_mosaic.version = 11 : i64} {
  func.func @_prefix_copy_kernel(%arg0: i32, %arg1: memref<16x32xf32, #tpu.memory_space<any>>, %arg2: memref<8x32xf32, #tpu.memory_space<any>>, %arg3: memref<!tpu.dma_semaphore, #tpu.memory_space<semaphore_mem>>) attributes {dimension_semantics = [#tpu.dimension_semantics<parallel>], iteration_bounds = array<i64: 1>, scalar_prefetch = 0 : i64, scratch_operands = 1 : i64, tpu.core_type = #tpu.core_type<tc>, window_params = [{}, {}]} {
    %c8_i32 = arith.constant 8 : i32
    %0 = arith.muli %arg0, %c8_i32 : i32
    %c0_i32 = arith.constant 0 : i32
    %1 = tpu.memref_slice %arg1[%0, %c0_i32] : memref<16x32xf32, #tpu.memory_space<any>> -> memref<8x32xf32, #tpu.memory_space<any>>
    %c0_i32_0 = arith.constant 0 : i32
    %2 = tpu.memref_slice %arg2[%0, %c0_i32_0] : memref<8x32xf32, #tpu.memory_space<any>> -> memref<8x32xf32, #tpu.memory_space<any>>
    tpu.enqueue_dma source(%1 : memref<8x32xf32, #tpu.memory_space<any>>) target(%2 : memref<8x32xf32, #tpu.memory_space<any>>) target_semaphore(%arg3 : memref<!tpu.dma_semaphore, #tpu.memory_space<semaphore_mem>>)
    %c0_i32_1 = arith.constant 0 : i32
    %3 = tpu.memref_slice %arg1[%0, %c0_i32_1] : memref<16x32xf32, #tpu.memory_space<any>> -> memref<8x32xf32, #tpu.memory_space<any>>
    %c0_i32_2 = arith.constant 0 : i32
    %4 = tpu.memref_slice %arg2[%0, %c0_i32_2] : memref<8x32xf32, #tpu.memory_space<any>> -> memref<8x32xf32, #tpu.memory_space<any>>
    tpu.wait_dma2 semaphore(%arg3 : memref<!tpu.dma_semaphore, #tpu.memory_space<semaphore_mem>>) src(%3 : memref<8x32xf32, #tpu.memory_space<any>>) dst(%4 : memref<8x32xf32, #tpu.memory_space<any>>)
    return
  }
}

</mosaic_0001>

<llo_original>
// kernel: tpu_custom_call.1
$region0: #{tpu_custom_call.1}
  #allocation0 [shape = 'u32[]', space=smem, size = 0x4, offset = 0x4, fixed_abs, tag = 'smem constant byte address 0x4 - core index']
  #allocation1 [shape = 'u32[144,128]{1,0:T(1,128)}', space=vmem, size = 0x12000, scoped, tag = 'internal scratch']
  #allocation2 [shape = 's32[1]{0}', space=sflag, size = 0x4, scoped, tag = 'scratch operand']
  #allocation3 [shape = 's32[]', space=sflag, size = 0x4, offset = 0, fixed_abs, tag = 'sflag constant byte address 0x0 - dummy sync flag']
  #allocation4 [shape = 'u32[0]{0}', space=smem, size = 0, offset = 0, fixed_abs, tag = 'smem constant byte address 0x0 - null']
  %s0 = inlined_call_operand.hbm [shape: f32[16,32], index: 0, kind: input, shape index: {}]
  %s1 = inlined_call_operand.hbm [shape: f32[8,32], index: 1, kind: output, shape index: {}]
  %s2 = sld [smem:[#allocation0]]
  $region2: #{tpu_custom_call.1} parent=0
    _
  %s4 = ssub.s32 1, %s2
  %s5 = scalar_select 0, %s4, %s2
  %s6 = smul.u32 0, 8
  %s7 = smul.addr %s6, 16
  %s8 = scalar_lea.hbm %s0, %s7
  %s9 = smul.addr %s6, 16
  %s10 = scalar_lea.hbm %s1, %s9
  %s12 = sshll.u32 1, 14
  %s13 = sxor.u32 4294967295, %s12
  %17 = dma.general %s8, 128, %s10, [#allocation2], 131072, [#allocation4], 0, 0
  %s18 = smul.u32 8, 1
  %s19 = sshll.u32 %s18, 4
  %20 = dma.done [#allocation2], %s19
  %21 = vsyncmov [#allocation2]
  %s22 = vpop.sfrf %21
  %p23 = scmp.eq.s32.totalorder %s22, 0
  %p24 = pneg %p23
  %26 = shalt.err (%p24)

</llo_original>
